<compile_context>
chip_gen: v7x
topology: tpu7x:2x2x1
jax: 0.10.0
libtpu: 0.0.40
codegen_flags: <defaults>
</compile_context>

<pallas_src>
import jax
import jax.numpy as jnp
from jax import lax
from jax.experimental import pallas as pl
from jax.experimental.pallas import tpu as pltpu


def _round_up(x, m):
    return ((x + m - 1) // m) * m


def net_kernel(x_ref, w36_ref, b128_ref, wf_ref, bf_ref, out_ref):
    # Fused conv at the 4 output positions: one (TM, 36) @ (36, 128) MXU pass
    # (bf16 operands, f32 accumulation).
    y = jnp.dot(x_ref[...], w36_ref[...], preferred_element_type=jnp.float32)
    y = jnp.maximum(y + b128_ref[...], 0.0)                      # ReLU(conv), (TM, 128) f32

    # MaxPool2d(2,2) on the 2x2 conv output == max over the 4 static 32-lane groups.
    pooled = jnp.maximum(jnp.maximum(y[:, 0:32], y[:, 32:64]),
                         jnp.maximum(y[:, 64:96], y[:, 96:128]))  # (TM, 32) f32

    # fc1 + ReLU (bf16 operands, f32 accumulate; elementwise stays f32).
    fc = jnp.dot(pooled.astype(wf_ref.dtype), wf_ref[...],
                 preferred_element_type=jnp.float32) + bf_ref[...]
    out_ref[...] = jnp.maximum(fc, 0.0)                           # (TM, 136)


def net_forward(x, w_conv, b_conv, w_fc, b_fc):
    """x: (N, 1, 6, 6) f32; w_conv: (32, 1, 5, 5); b_conv: (32,);
    w_fc: (136, 32) (PyTorch Linear layout); b_fc: (136,)."""
    N = x.shape[0]
    assert x.shape[1:] == (1, 6, 6), "Net requires NCHW input of shape (N, 1, 6, 6)"

    x_flat = x.reshape(N, 36)                         # lane-dense activation slab

    # Zero-scattered fused conv weight: W36[(i+kh)*6+(j+kw), (2*i+j)*32 + o] = w[o,0,kh,kw]
    wc25 = w_conv.reshape(32, 25).T                   # (25, 32), kh-major flattening
    w36 = jnp.zeros((36, 128), jnp.float32)
    kh = jnp.arange(5)
    kw = jnp.arange(5)
    for i in range(2):
        for j in range(2):
            rows = ((i + kh)[:, None] * 6 + (j + kw)[None, :]).reshape(25)
            cols = (2 * i + j) * 32 + jnp.arange(32)
            w36 = w36.at[rows[:, None], cols[None, :]].set(wc25)
    b128 = jnp.tile(b_conv.reshape(1, 32), (1, 4))    # (1, 128) f32
    wf = w_fc.T                                       # (32, 136)
    bf = b_fc.reshape(1, 136)

    # bf16 MXU operands (f32 accumulation happens in-kernel).
    x_bf = x_flat.astype(jnp.bfloat16)
    w36_bf = w36.astype(jnp.bfloat16)
    wf_bf = wf.astype(jnp.bfloat16)

    # Batch tiling: TM multiple of 8, capped so small batches don't over-pad.
    TM = min(512, _round_up(max(N, 1), 8))
    N_pad = _round_up(N, TM)
    if N_pad != N:
        x_bf = jnp.pad(x_bf, ((0, N_pad - N), (0, 0)))

    out = pl.pallas_call(
        net_kernel,
        out_shape=jax.ShapeDtypeStruct((N_pad, 136), jnp.float32),
        grid=(N_pad // TM,),
        in_specs=[
            pl.BlockSpec((TM, 36), lambda i: (i, 0)),     # activations: tiled over batch
            pl.BlockSpec((36, 128), lambda i: (0, 0)),    # fused conv weight: VMEM-resident
            pl.BlockSpec((1, 128), lambda i: (0, 0)),     # conv bias (tiled x4): resident
            pl.BlockSpec((32, 136), lambda i: (0, 0)),    # fc weight: resident
            pl.BlockSpec((1, 136), lambda i: (0, 0)),     # fc bias: resident
        ],
        out_specs=pl.BlockSpec((TM, 136), lambda i: (i, 0)),
        compiler_params=pltpu.CompilerParams(
            dimension_semantics=("parallel",)),           # megacore sharding on v7x
    )(x_bf, w36_bf, b128, wf_bf, bf)
    return out[:N]


def net_reference(x, w_conv, b_conv, w_fc, b_fc):
    """Pure-JAX reference mirroring the PyTorch forward, with the same bf16-operand /
    f32-accumulate numerics as the kernel (so tolerances stay tight)."""
    xr = x.astype(jnp.bfloat16).astype(jnp.float32)
    wcr = w_conv.astype(jnp.bfloat16).astype(jnp.float32)
    wfr = w_fc.astype(jnp.bfloat16).astype(jnp.float32)

    conv = lax.conv_general_dilated(
        xr, wcr, window_strides=(1, 1), padding="VALID",
        dimension_numbers=("NCHW", "OIHW", "NCHW"),
        precision=lax.Precision.HIGHEST) + b_conv.reshape(1, 32, 1, 1)
    conv = jnp.maximum(conv, 0.0)                  # (N, 32, 2, 2)
    pooled = jnp.max(conv, axis=(2, 3))            # MaxPool2d(2,2) -> (N, 32)
    pooled = pooled.astype(jnp.bfloat16).astype(jnp.float32)
    fc = jnp.dot(pooled, wfr.T, precision=lax.Precision.HIGHEST) + b_fc
    return jnp.maximum(fc, 0.0)                    # (N, 136)


if __name__ == "__main__":
    key = jax.random.PRNGKey(0)
    kx, kw1, kb1, kw2, kb2 = jax.random.split(key, 5)

    N = 2
    x = jax.random.normal(kx, (N, 1, 6, 6), dtype=jnp.float32)

    # Deterministic parameter init (uniform, PyTorch-style bounds).
    bound1 = 1.0 / (25.0 ** 0.5)
    w_conv = jax.random.uniform(kw1, (32, 1, 5, 5), jnp.float32, -bound1, bound1)
    b_conv = jax.random.uniform(kb1, (32,), jnp.float32, -bound1, bound1)
    bound2 = 1.0 / (32.0 ** 0.5)
    w_fc = jax.random.uniform(kw2, (136, 32), jnp.float32, -bound2, bound2)
    b_fc = jax.random.uniform(kb2, (136,), jnp.float32, -bound2, bound2)

    out = net_forward(x, w_conv, b_conv, w_fc, b_fc)
    out = jax.block_until_ready(out)

    ref = net_reference(x, w_conv, b_conv, w_fc, b_fc)
    assert out.shape == (N, 136)
    assert jnp.allclose(out, ref, atol=2e-3, rtol=2e-3), "mismatch vs reference"

    print("KERNEL_OK")
</pallas_src>

<mosaic_0001>
module attributes {stable_mosaic.version = 11 : i64} {
  func.func @net_kernel(%arg0: i32, %arg1: memref<8x36xbf16, #tpu.memory_space<vmem>>, %arg2: memref<36x128xbf16, #tpu.memory_space<vmem>>, %arg3: memref<1x128xf32, #tpu.memory_space<vmem>>, %arg4: memref<32x136xbf16, #tpu.memory_space<vmem>>, %arg5: memref<1x136xf32, #tpu.memory_space<vmem>>, %arg6: memref<8x136xf32, #tpu.memory_space<vmem>>) attributes {dimension_semantics = [#tpu.dimension_semantics<parallel>], iteration_bounds = array<i64: 1>, scalar_prefetch = 0 : i64, scratch_operands = 0 : i64, tpu.core_type = #tpu.core_type<tc>, window_params = [{transform_indices = @transform_0, window_bounds = array<i64: 8, 36>}, {pipeline_mode = #tpu.pipeline_mode<synchronous>, transform_indices = @transform_1, window_bounds = array<i64: 36, 128>}, {pipeline_mode = #tpu.pipeline_mode<synchronous>, transform_indices = @transform_2, window_bounds = array<i64: 1, 128>}, {pipeline_mode = #tpu.pipeline_mode<synchronous>, transform_indices = @transform_3, window_bounds = array<i64: 32, 136>}, {pipeline_mode = #tpu.pipeline_mode<synchronous>, transform_indices = @transform_4, window_bounds = array<i64: 1, 136>}, {transform_indices = @transform_5, window_bounds = array<i64: 8, 136>}]} {
    %c0 = arith.constant 0 : index
    %c0_0 = arith.constant 0 : index
    %0 = vector.load %arg1[%c0, %c0_0] : memref<8x36xbf16, #tpu.memory_space<vmem>>, vector<8x36xbf16>
    %c0_1 = arith.constant 0 : index
    %c0_2 = arith.constant 0 : index
    %1 = vector.load %arg2[%c0_1, %c0_2] : memref<36x128xbf16, #tpu.memory_space<vmem>>, vector<36x128xbf16>
    %cst = arith.constant dense<0.000000e+00> : vector<8x128xf32>
    %2 = tpu.matmul %0, %1, %cst {dimension_numbers = #tpu.dot_dimension_numbers<[1], [0], [0], [1], [0, 0, 1, 1], [], []>} : vector<8x36xbf16>, vector<36x128xbf16>, vector<8x128xf32> -> vector<8x128xf32>
    %c0_3 = arith.constant 0 : index
    %c0_4 = arith.constant 0 : index
    %3 = vector.load %arg3[%c0_3, %c0_4] : memref<1x128xf32, #tpu.memory_space<vmem>>, vector<1x128xf32>
    %4 = vector.broadcast %3 : vector<1x128xf32> to vector<8x128xf32>
    %5 = arith.addf %2, %4 : vector<8x128xf32>
    %cst_5 = arith.constant 0.000000e+00 : f32
    %6 = vector.broadcast %cst_5 : f32 to vector<8x128xf32>
    %7 = arith.maximumf %5, %6 : vector<8x128xf32>
    %8 = vector.extract_strided_slice %7 {offsets = [0, 0], sizes = [8, 32], strides = [1, 1]} : vector<8x128xf32> to vector<8x32xf32>
    %9 = vector.extract_strided_slice %7 {offsets = [0, 32], sizes = [8, 32], strides = [1, 1]} : vector<8x128xf32> to vector<8x32xf32>
    %10 = arith.maximumf %8, %9 : vector<8x32xf32>
    %11 = vector.extract_strided_slice %7 {offsets = [0, 64], sizes = [8, 32], strides = [1, 1]} : vector<8x128xf32> to vector<8x32xf32>
    %12 = vector.extract_strided_slice %7 {offsets = [0, 96], sizes = [8, 32], strides = [1, 1]} : vector<8x128xf32> to vector<8x32xf32>
    %13 = arith.maximumf %11, %12 : vector<8x32xf32>
    %14 = arith.maximumf %10, %13 : vector<8x32xf32>
    %15 = arith.truncf %14 : vector<8x32xf32> to vector<8x32xbf16>
    %c0_6 = arith.constant 0 : index
    %c0_7 = arith.constant 0 : index
    %16 = vector.load %arg4[%c0_6, %c0_7] : memref<32x136xbf16, #tpu.memory_space<vmem>>, vector<32x136xbf16>
    %cst_8 = arith.constant dense<0.000000e+00> : vector<8x136xf32>
    %17 = tpu.matmul %15, %16, %cst_8 {dimension_numbers = #tpu.dot_dimension_numbers<[1], [0], [0], [1], [0, 0, 1, 1], [], []>} : vector<8x32xbf16>, vector<32x136xbf16>, vector<8x136xf32> -> vector<8x136xf32>
    %c0_9 = arith.constant 0 : index
    %c0_10 = arith.constant 0 : index
    %18 = vector.load %arg5[%c0_9, %c0_10] : memref<1x136xf32, #tpu.memory_space<vmem>>, vector<1x136xf32>
    %19 = vector.broadcast %18 : vector<1x136xf32> to vector<8x136xf32>
    %20 = arith.addf %17, %19 : vector<8x136xf32>
    %cst_11 = arith.constant 0.000000e+00 : f32
    %21 = vector.broadcast %cst_11 : f32 to vector<8x136xf32>
    %22 = arith.maximumf %20, %21 : vector<8x136xf32>
    %c0_12 = arith.constant 0 : index
    %c0_13 = arith.constant 0 : index
    %23 = vector.load %arg6[%c0_12, %c0_13] : memref<8x136xf32, #tpu.memory_space<vmem>>, vector<8x136xf32>
    tpu.vector_store %arg6[%c0_12, %c0_13], %22 {strides = array<i32>} : memref<8x136xf32, #tpu.memory_space<vmem>>, vector<8x136xf32>,
    return
  }
  func.func @transform_0(%arg0: i32) -> (i32, i32) {
    %c0_i32 = arith.constant 0 : i32
    %c0_i32_0 = arith.constant 0 : i32
    return %arg0, %c0_i32 : i32, i32
  }
  func.func @transform_1(%arg0: i32) -> (i32, i32) {
    %c0_i32 = arith.constant 0 : i32
    %c0_i32_0 = arith.constant 0 : i32
    %c0_i32_1 = arith.constant 0 : i32
    return %c0_i32, %c0_i32_0 : i32, i32
  }
  func.func @transform_2(%arg0: i32) -> (i32, i32) {
    %c0_i32 = arith.constant 0 : i32
    %c0_i32_0 = arith.constant 0 : i32
    %c0_i32_1 = arith.constant 0 : i32
    return %c0_i32, %c0_i32_0 : i32, i32
  }
  func.func @transform_3(%arg0: i32) -> (i32, i32) {
    %c0_i32 = arith.constant 0 : i32
    %c0_i32_0 = arith.constant 0 : i32
    %c0_i32_1 = arith.constant 0 : i32
    return %c0_i32, %c0_i32_0 : i32, i32
  }
  func.func @transform_4(%arg0: i32) -> (i32, i32) {
    %c0_i32 = arith.constant 0 : i32
    %c0_i32_0 = arith.constant 0 : i32
    %c0_i32_1 = arith.constant 0 : i32
    return %c0_i32, %c0_i32_0 : i32, i32
  }
  func.func @transform_5(%arg0: i32) -> (i32, i32) {
    %c0_i32 = arith.constant 0 : i32
    %c0_i32_0 = arith.constant 0 : i32
    return %arg0, %c0_i32 : i32, i32
  }
}

</mosaic_0001>

<llo_original>
// kernel: tpu_custom_call.1
$region0: #{tpu_custom_call.1}
  #allocation0 [shape = 'u32[]', space=smem, size = 0x4, offset = 0x4, fixed_abs, tag = 'smem constant byte address 0x4 - core index']
  #allocation1 [shape = 'u32[144,128]{1,0:T(1,128)}', space=vmem, size = 0x12000, scoped, tag = 'internal scratch']
  %s0 = inlined_call_operand.hbm [shape: bf16[8,36], index: 0, kind: input, shape index: {}]
  %s1 = inlined_call_operand.hbm [shape: bf16[36,128], index: 1, kind: input, shape index: {}]
  %s2 = inlined_call_operand.vmem [shape: f32[1,128], index: 2, kind: input, shape index: {}]
  %s3 = inlined_call_operand.hbm [shape: bf16[32,136], index: 3, kind: input, shape index: {}]
  %s4 = inlined_call_operand.vmem [shape: f32[1,136], index: 4, kind: input, shape index: {}]
  %s5 = inlined_call_operand.hbm [shape: f32[8,136], index: 5, kind: output, shape index: {}]
  %s6 = sld [smem:[#allocation0]]
  $region42: #{tpu_custom_call.1} parent=0
    _
  %s8 = ssub.s32 1, %s6
  %s9 = scalar_select 0, %s8, %s6
  $region1: #{tpu_custom_call.1} parent=0
    #allocation2 [shape = 'u8[2048]{0}', space=vmem, size = 0x800, scoped, tag = 'input window, operand 0, single buffered']
    #allocation3 [shape = 's32[1]{0}', space=sflag, size = 0x4, scoped, tag = 'scoped memory for tpu_custom_call.1']
    #allocation4 [shape = 's32[1]{0}', space=sflag, size = 0x4, scoped, tag = 'scoped memory for tpu_custom_call.1']
    #allocation5 [shape = 'u8[10240]{0}', space=vmem, size = 0x2800, scoped, tag = 'input window, operand 1, single buffered']
    #allocation6 [shape = 's32[1]{0}', space=sflag, size = 0x4, scoped, tag = 'scoped memory for tpu_custom_call.1']
    #allocation7 [shape = 'u8[16384]{0}', space=vmem, size = 0x4000, scoped, tag = 'input window, operand 3, single buffered']
    #allocation8 [shape = 'u8[8192]{0}', space=vmem, size = 0x2000, scoped, tag = 'output window, operand 0, single buffered']
    %10 = vsyncpa [#allocation3], 0
    %11 = vsyncpa [#allocation6], 0
    %12 = vsyncpa [#allocation4], 0
    // Predicated region
    $region2: #{tpu_custom_call.1} parent=1 // pred_check
      _
    $region3: #{tpu_custom_call.1} parent=1 // pred_check_branch
      %14 = sbr.rel (0) target = $region5
    $region4: #{tpu_custom_call.1} parent=1 // pred_region
      %s16 = ssub.s32 64, 64
      %17 = vsyncadd [#allocation3], %s16
      %s19 = sshll.u32 [#allocation2], 4
      %s20 = int_to_ptr.vmem [resolvable:$true] %s19
      %22 = dma.hbm_to_vmem [thread:$0]  %s0, 64, %s20, [#allocation3]
    $region5: #{tpu_custom_call.1} parent=1 // pred_fallthru
      _
    // Predicated region
    $region6: #{tpu_custom_call.1} parent=1 // pred_check
      _
    $region7: #{tpu_custom_call.1} parent=1 // pred_check_branch
      %24 = sbr.rel (0) target = $region9
    $region8: #{tpu_custom_call.1} parent=1 // pred_region
      %s26 = ssub.s32 320, 320
      %27 = vsyncadd [#allocation6], %s26
      %s28 = sshll.u32 [#allocation5], 4
      %s29 = int_to_ptr.vmem [resolvable:$true] %s28
      %34 = dma.hbm_to_vmem [thread:$0]  %s1, 320, %s29, [#allocation6], 64, 64, 4
    $region9: #{tpu_custom_call.1} parent=1 // pred_fallthru
      _
    // Predicated region
    $region10: #{tpu_custom_call.1} parent=1 // pred_check
      _
    $region11: #{tpu_custom_call.1} parent=1 // pred_check_branch
      %36 = sbr.rel (0) target = $region13
    $region12: #{tpu_custom_call.1} parent=1 // pred_region
      _
    $region13: #{tpu_custom_call.1} parent=1 // pred_fallthru
      _
    // Predicated region
    $region14: #{tpu_custom_call.1} parent=1 // pred_check
      _
    $region15: #{tpu_custom_call.1} parent=1 // pred_check_branch
      %38 = sbr.rel (0) target = $region17
    $region16: #{tpu_custom_call.1} parent=1 // pred_region
      %s40 = ssub.s32 512, 512
      %41 = vsyncadd [#allocation6], %s40
      %s42 = sshll.u32 [#allocation7], 4
      %s43 = int_to_ptr.vmem [resolvable:$true] %s42
      %48 = dma.hbm_to_vmem [thread:$0]  %s3, 512, %s43, [#allocation6], 128, 128, 8
    $region17: #{tpu_custom_call.1} parent=1 // pred_fallthru
      _
    // Predicated region
    $region18: #{tpu_custom_call.1} parent=1 // pred_check
      _
    $region19: #{tpu_custom_call.1} parent=1 // pred_check_branch
      %50 = sbr.rel (0) target = $region21
    $region20: #{tpu_custom_call.1} parent=1 // pred_region
      _
    $region21: #{tpu_custom_call.1} parent=1 // pred_fallthru
      _
    // Predicated region
    $region22: #{tpu_custom_call.1} parent=1 // pred_check
      _
    $region23: #{tpu_custom_call.1} parent=1 // pred_check_branch
      %52 = sbr.rel (0) target = $region25
    $region24: #{tpu_custom_call.1} parent=1 // pred_region
      %53 = dma.done [#allocation3], 64
    $region25: #{tpu_custom_call.1} parent=1 // pred_fallthru
      _
    // Predicated region
    $region26: #{tpu_custom_call.1} parent=1 // pred_check
      _
    $region27: #{tpu_custom_call.1} parent=1 // pred_check_branch
      %55 = sbr.rel (0) target = $region29
    $region28: #{tpu_custom_call.1} parent=1 // pred_region
      %56 = dma.done [#allocation6], 320
    $region29: #{tpu_custom_call.1} parent=1 // pred_fallthru
      _
    // Predicated region
    $region30: #{tpu_custom_call.1} parent=1 // pred_check
      _
    $region31: #{tpu_custom_call.1} parent=1 // pred_check_branch
      %58 = sbr.rel (0) target = $region33
    $region32: #{tpu_custom_call.1} parent=1 // pred_region
      %59 = dma.done [#allocation6], 512
    $region33: #{tpu_custom_call.1} parent=1 // pred_fallthru
      _
    %v61 = vld [vmem:[#allocation2] sm:$0xf]
    %v62 = vld [vmem:[#allocation5] sm:$0xf]
    %v63 = vld [vmem:[#allocation5 + $0x4] sm:$0xf]
    %v64 = vld [vmem:[#allocation5 + $0x8] sm:$0xf]
    %v65 = vld [vmem:[#allocation5 + $0xc] sm:$0xf]
    %v66 = vld [vmem:[#allocation5 + $0x10] sm:$0x3]
    %v67 = vld [vmem:[%s2] sm:$0x1]
    %v69 = vlaneseq
    %v70 = vshrl.u32 %v69, 7
    %v71 = vsub.s32 0, %v70
    %v72 = vrot.slane %v67, %v71
    %v79 = vunpack.c.l.b16 %v62
    %v80 = vunpack.c.l.b16 %v63
    %v81 = vunpack.c.l.b16 %v64
    %v82 = vunpack.c.l.b16 %v65
    %v83 = vunpack.c.l.b16 %v66
    %v84 = vpack.c.b16 %v80, %v79
    %v85 = vpack.c.b16 %v82, %v81
    %v86 = vpack.c.b16 %v83, %v83
    %vm89 = vcmask 293888
    %v91 = vsel %vm89, %v61, 0
    %vm93 = vcmask 1041408
    %v95 = vsel %vm93, %v86, 0
    %97 = vmatprep.subr.bf16.mxu0 0
    %98 = vmatpush1.bf16.msra.mxu0 %v84
    %99 = vmatprep.subr.bf16.mxu0 0
    %100 = vmatpush1.bf16.msra.mxu0 %v85
    %101 = vmatprep.subr.bf16.mxu0 0
    %102 = vmatpush1.bf16.msra.mxu0 %v95
    %103 = vmatprep.subr.bf16.mxu0 0
    %104 = vmatpush1.bf16.msra.mxu0 0
    %105 = vmatprep.subr.bf16.mxu0 0
    %106 = vmatpush1.bf16.msra.mxu0 0
    %107 = vmatprep.subr.bf16.mxu0 0
    %108 = vmatpush1.bf16.msra.mxu0 0
    %109 = vmatprep.subr.bf16.mxu0 0
    %110 = vmatpush1.bf16.msra.mxu0 0
    %111 = vmatprep.subr.bf16.mxu0 0
    %112 = vmatpush1.bf16.msra.mxu0 0
    %113 = vmatprep.subr.bf16.mxu0 0
    %114 = vmatpush1.bf16.msra.mxu0 0
    %115 = vmatprep.subr.bf16.mxu0 0
    %116 = vmatpush1.bf16.msra.mxu0 0
    %117 = vmatprep.subr.bf16.mxu0 0
    %118 = vmatpush1.bf16.msra.mxu0 0
    %119 = vmatprep.subr.bf16.mxu0 0
    %120 = vmatpush1.bf16.msra.mxu0 0
    %121 = vmatprep.subr.bf16.mxu0 0
    %122 = vmatpush1.bf16.msra.mxu0 0
    %123 = vmatprep.subr.bf16.mxu0 0
    %124 = vmatpush1.bf16.msra.mxu0 0
    %125 = vmatprep.subr.bf16.mxu0 0
    %126 = vmatpush1.bf16.msra.mxu0 0
    %127 = vmatprep.subr.bf16.mxu0 0
    %128 = vmatpush1.bf16.msra.mxu0 0
    %129 = vmatprep.mubr.bf16.mxu0 0
    %130 = vmatmul.mubr.bf16.gmra.mrb[0].mxu0 %v91
    %v131 = vpop.f32.mrb[0].mxu0
    %v132 = vadd.f32 %v72, %v131
    %v133 = vpop.f32.mrb[0].mxu0
    %v134 = vpop.f32.mrb[0].mxu0
    %v135 = vpop.f32.mrb[0].mxu0
    %136 = vdwg.mxu0
    %v137 = vmax.f32 %v132, 0.0
    %139 = vrot.lane.b32.xlu0 %v137, 96
    %v140 = vpop.permute.xlu0 %139
    %v142 = vmax.f32 %v137, %v140
    %144 = vrot.lane.b32.xlu0 %v142, 64
    %v145 = vpop.permute.xlu0 %144
    %v147 = vmax.f32 %v142, %v145
    %v148 = vpack.c.bf16 %v147, %v147
    %v149 = vld [vmem:[#allocation7] sm:$0xff]
    %v150 = vld [vmem:[#allocation7 + $0x8] sm:$0xff]
    %v151 = vld [vmem:[#allocation7 + $0x10] sm:$0xff]
    %v152 = vld [vmem:[#allocation7 + $0x18] sm:$0xff]
    %v153 = vld [vmem:[%s4] sm:$0x3]
    %v155 = vlaneseq
    %v156 = vshrl.u32 %v155, 7
    %v157 = vsub.s32 0, %v156
    %v158 = vrot.slane %v153, %v157
    %v159 = vlaneseq
    %v160 = vshrl.u32 %v159, 7
    %v161 = vsub.s32 1, %v160
    %v162 = vrot.slane %v153, %v161
    %v169 = vunpack.c.l.b16 %v149
    %v170 = vunpack.c.h.b16 %v149
    %v171 = vunpack.c.l.b16 %v150
    %v172 = vunpack.c.h.b16 %v150
    %v173 = vunpack.c.l.b16 %v151
    %v174 = vunpack.c.h.b16 %v151
    %v175 = vunpack.c.l.b16 %v152
    %v176 = vunpack.c.h.b16 %v152
    %v177 = vpack.c.b16 %v171, %v169
    %v178 = vpack.c.b16 %v172, %v170
    %v179 = vpack.c.b16 %v175, %v173
    %v180 = vpack.c.b16 %v176, %v174
    %vm185 = vcmask 261120
    %v187 = vsel %vm185, %v148, 0
    %189 = vmatprep.subr.bf16.mxu0 %v178
    %190 = vmatpush1.bf16.msra.mxu0 %v177
    %191 = vmatprep.subr.bf16.mxu0 %v180
    %192 = vmatpush1.bf16.msra.mxu0 %v179
    %193 = vmatprep.subr.bf16.mxu0 0
    %194 = vmatpush1.bf16.msra.mxu0 0
    %195 = vmatprep.subr.bf16.mxu0 0
    %196 = vmatpush1.bf16.msra.mxu0 0
    %197 = vmatprep.subr.bf16.mxu0 0
    %198 = vmatpush1.bf16.msra.mxu0 0
    %199 = vmatprep.subr.bf16.mxu0 0
    %200 = vmatpush1.bf16.msra.mxu0 0
    %201 = vmatprep.subr.bf16.mxu0 0
    %202 = vmatpush1.bf16.msra.mxu0 0
    %203 = vmatprep.subr.bf16.mxu0 0
    %204 = vmatpush1.bf16.msra.mxu0 0
    %205 = vmatprep.subr.bf16.mxu0 0
    %206 = vmatpush1.bf16.msra.mxu0 0
    %207 = vmatprep.subr.bf16.mxu0 0
    %208 = vmatpush1.bf16.msra.mxu0 0
    %209 = vmatprep.subr.bf16.mxu0 0
    %210 = vmatpush1.bf16.msra.mxu0 0
    %211 = vmatprep.subr.bf16.mxu0 0
    %212 = vmatpush1.bf16.msra.mxu0 0
    %213 = vmatprep.subr.bf16.mxu0 0
    %214 = vmatpush1.bf16.msra.mxu0 0
    %215 = vmatprep.subr.bf16.mxu0 0
    %216 = vmatpush1.bf16.msra.mxu0 0
    %217 = vmatprep.subr.bf16.mxu0 0
    %218 = vmatpush1.bf16.msra.mxu0 0
    %219 = vmatprep.subr.bf16.mxu0 0
    %220 = vmatpush1.bf16.msra.mxu0 0
    %221 = vmatprep.mubr.bf16.mxu0 0
    %222 = vmatmul.mubr.bf16.gmra.mrb[0].mxu0 %v187
    %v223 = vpop.f32.mrb[0].mxu0
    %v224 = vadd.f32 %v158, %v223
    %v225 = vpop.f32.mrb[0].mxu0
    %v226 = vadd.f32 %v162, %v225
    %v227 = vpop.f32.mrb[0].mxu0
    %v228 = vpop.f32.mrb[0].mxu0
    %229 = vdwg.mxu0
    %v230 = vmax.f32 %v224, 0.0
    %v231 = vmax.f32 %v226, 0.0
    %232 = vst [vmem:[#allocation8] sm:$0xff] %v230
    %vm233 = vcmask 64512
    %234 = vst.msk [vmem:[#allocation8 + $0x8] sm:$0xff] %vm233, %v231
    // Predicated region
    $region34: #{tpu_custom_call.1} parent=1 // pred_check
      _
    $region35: #{tpu_custom_call.1} parent=1 // pred_check_branch
      %236 = sbr.rel (0) target = $region37
    $region36: #{tpu_custom_call.1} parent=1 // pred_region
      %s238 = ssub.s32 256, 256
      %239 = vsyncadd [#allocation4], %s238
      %s241 = sshll.u32 [#allocation8], 4
      %s242 = int_to_ptr.vmem [resolvable:$true] %s241
      %244 = dma.vmem_to_hbm [thread:$0]  %s242, 256, %s5, [#allocation4]
    $region37: #{tpu_custom_call.1} parent=1 // pred_fallthru
      _
    // Predicated region
    $region38: #{tpu_custom_call.1} parent=1 // pred_check
      _
    $region39: #{tpu_custom_call.1} parent=1 // pred_check_branch
      %246 = sbr.rel (0) target = $region41
    $region40: #{tpu_custom_call.1} parent=1 // pred_region
      %247 = dma.done [#allocation4], 256
    $region41: #{tpu_custom_call.1} parent=1 // pred_fallthru
      _
    %248 = vsyncpa [#allocation3], 1
    %249 = vsyncpa [#allocation6], 1
    %250 = vsyncpa [#allocation4], 1

</llo_original>
